<compile_context>
chip_gen: v7x
topology: tpu7x:2x2x1
jax: 0.10.0
libtpu: 0.0.40
codegen_flags: <defaults>
</compile_context>

<pallas_src>
import jax
import jax.numpy as jnp
from jax import lax
from jax.experimental import pallas as pl
from jax.experimental.pallas import tpu as pltpu


def gen_dx_bx(xbound, ybound, zbound):
    dx = [float(row[2]) for row in (xbound, ybound, zbound)]
    bx = [float(row[0] + row[2] / 2.0) for row in (xbound, ybound, zbound)]
    nx = [int((row[1] - row[0]) / row[2]) for row in (xbound, ybound, zbound)]
    return dx, bx, nx


def _round_up(x, m):
    return ((x + m - 1) // m) * m


def _default_ow_dtype():
    # bf16 one-hot accumulation only where the VPU has native bf16 (v6e/v7x).
    try:
        kind = jax.devices()[0].device_kind.lower()
    except Exception:
        return jnp.float32
    if any(tag in kind for tag in ("v2", "v3", "v4", "v5")):
        return jnp.float32
    return jnp.bfloat16


def _vmem_budget_bytes():
    # Derive the VMEM request from the hardware instead of hardcoding 64 MiB
    # (which is the entire physical per-TC VMEM on v7x).
    try:
        phys = int(pltpu.get_tpu_info().vmem_capacity_bytes)
    except Exception:
        phys = 64 * 1024 * 1024
    return int(min(48 * 1024 * 1024, (phys * 3) // 4))


def _pool_vmem_estimate(v_tile, hwc, C, D, ow_bytes):
    dbl_inputs = 2 * (D * hwc * 2 + C * hwc * 2 + 2 * hwc * 4)   # bf16/bf16/f32
    out_blk = 2 * C * v_tile * 4                                  # f32 out block
    ow = v_tile * hwc * ow_bytes                                  # one-hot carry
    return dbl_inputs + out_blk + 3 * ow                          # + temps


# ----------------------------------------------------------------------------
# Shared per-point geometry (used by BOTH kernels so the flat ids computed for
# the occupancy mask and the ids recomputed inside the pool kernel are
# bit-identical).
#   p1  = A @ (u, v, d) + a          A = inv(post_rots), a = -A@post_trans
#   p2  = (p1.x*p1.z, p1.y*p1.z, p1.z)
#   g   = Bm @ p2 + bv               Bm = extra_rots@inv(l2e_R)@rots@inv(K)
#   id  = z*(NX*NY) + x*NY + y  (or -1 if outside the BEV grid)
# ----------------------------------------------------------------------------
def _depth_values(d_idx_i32, dstart, dstep):
    return d_idx_i32.astype(jnp.float32) * dstep + dstart


def _flat_voxel_ids(u, v, dval, par, geom_consts):
    NX, NY, NZ, sx, sy, sz, dx0, dx1, dx2 = geom_consts
    (A00, A01, A02, A10, A11, A12, A20, A21, A22,
     a0, a1, a2,
     B00, B01, B02, B10, B11, B12, B20, B21, B22,
     b0, b1, b2) = par
    p1x = A00 * u + A01 * v + A02 * dval + a0
    p1y = A10 * u + A11 * v + A12 * dval + a1
    p1z = A20 * u + A21 * v + A22 * dval + a2
    p2x = p1x * p1z
    p2y = p1y * p1z
    gx = B00 * p2x + B01 * p2y + B02 * p1z + b0
    gy = B10 * p2x + B11 * p2y + B12 * p1z + b1
    gz = B20 * p2x + B21 * p2y + B22 * p1z + b2
    # matches torch ((geom - (bx - dx/2)) / dx).long()  (trunc toward 0)
    xi = ((gx - sx) / dx0).astype(jnp.int32)
    yi = ((gy - sy) / dx1).astype(jnp.int32)
    zi = ((gz - sz) / dx2).astype(jnp.int32)
    kept = ((xi >= 0) & (xi < NX) & (yi >= 0) & (yi < NY)
            & (zi >= 0) & (zi < NZ))
    flat = zi * (NX * NY) + xi * NY + yi
    return jnp.where(kept, flat, -1)


# ----------------------------------------------------------------------------
# Kernel 1: frustum -> int32 flat voxel index per point (occupancy source).
# ----------------------------------------------------------------------------
def _make_geom_kernel(D, geom_consts, dstart, dstep):
    def kernel(uv_ref, par_ref, out_ref):
        i = pl.program_id(0)
        u = uv_ref[0:1, :]                                  # (1, hwc) pixel x
        v = uv_ref[1:2, :]                                  # (1, hwc) pixel y
        dval = _depth_values(
            lax.broadcasted_iota(jnp.int32, (D, 1), 0), dstart, dstep)
        par = [par_ref[i, k] for k in range(24)]            # SMEM scalars
        out_ref[...] = _flat_voxel_ids(u, v, dval, par, geom_consts)
    return kernel


def run_geometry_ids(uv_pad, params, D, hwc, geom_consts, dstart, dstep):
    """uv_pad: (2, HW_pad) f32; params: (B*N, 24) f32.
    Returns (B*N, D, HW_pad) int32 flat voxel ids (-1 = culled)."""
    BN = params.shape[0]
    HW_pad = uv_pad.shape[1]
    n_hw = HW_pad // hwc
    kernel = _make_geom_kernel(D, geom_consts, dstart, dstep)
    return pl.pallas_call(
        kernel,
        out_shape=jax.ShapeDtypeStruct((BN, D, HW_pad), jnp.int32),
        grid=(BN, n_hw),
        in_specs=[
            pl.BlockSpec((2, hwc), lambda i, h: (0, h)),
            pl.BlockSpec(memory_space=pltpu.MemorySpace.SMEM),
        ],
        out_specs=pl.BlockSpec((None, D, hwc), lambda i, h: (i, 0, h)),
        compiler_params=pltpu.CompilerParams(
            dimension_semantics=("parallel", "parallel")),
    )(uv_pad, params)


# ----------------------------------------------------------------------------
# Kernel 2: fused geometry + depth-weighted bev_pool with occupancy skipping.
# ----------------------------------------------------------------------------
def _make_pool_kernel(D, V_TILE, N, n_hw, n_vt, geom_consts, dstart, dstep,
                      ow_dtype, unroll):
    def kernel(occ_ref, uv_ref, par_ref, depth_ref, feat_ref, out_ref):
        b = pl.program_id(0)
        vt = pl.program_id(1)
        n = pl.program_id(2)
        h = pl.program_id(3)

        @pl.when((n == 0) & (h == 0))
        def _init():
            out_ref[...] = jnp.zeros_like(out_ref)

        occ_idx = ((b * N + n) * n_hw + h) * n_vt + vt

        @pl.when(occ_ref[occ_idx] > 0)
        def _accumulate():
            cam = b * N + n
            par = [par_ref[cam, k] for k in range(24)]       # SMEM scalars
            u = uv_ref[0:1, :]                               # (1, hwc)
            vpx = uv_ref[1:2, :]
            hwc = u.shape[-1]
            vox = (lax.broadcasted_iota(jnp.int32, (V_TILE, 1), 0)
                   + vt * V_TILE)                            # (V_TILE, 1)

            def contrib(d):
                # recompute the flat voxel id for depth bin d (bit-identical
                # to kernel 1) instead of re-streaming it from HBM.
                dval = _depth_values(jnp.asarray(d, dtype=jnp.int32),
                                     dstart, dstep)
                flat = _flat_voxel_ids(u, vpx, dval, par, geom_consts)
                dr = depth_ref[pl.ds(d, 1), :].astype(ow_dtype)
                return jnp.where(vox == flat, dr, jnp.zeros((), ow_dtype))

            nf = D // unroll
            rem = D - nf * unroll

            # unrolled-by-`unroll` depth loop: the big (V_TILE, hwc) carry is
            # read-modify-written once per chunk instead of once per bin.
            def chunk(c, acc):
                base = c * unroll
                for uu in range(unroll):
                    acc = acc + contrib(base + uu)
                return acc

            ow = lax.fori_loop(0, nf, chunk,
                               jnp.zeros((V_TILE, hwc), ow_dtype))
            for uu in range(rem):
                ow = ow + contrib(nf * unroll + uu)

            # scatter-add == one bf16 MXU matmul per occupied step:
            # (C, hwc) x (V_TILE, hwc)^T -> (C, V_TILE), f32 accumulation.
            out_ref[...] += jnp.einsum(
                'ch,vh->cv', feat_ref[...], ow.astype(jnp.bfloat16),
                preferred_element_type=jnp.float32)

    return kernel


def run_bev_pool(occ, uv_pad, params, depth, feat, *, v_tile, hwc, n_vt, n_hw,
                 V_pad, geom_consts, dstart, dstep, ow_dtype, unroll,
                 vmem_limit):
    """occ: (B*N*n_hw*n_vt,) int32; uv_pad: (2, HW_pad) f32; params: (B*N,24)
    f32; depth: (B,N,D,HW_pad) bf16; feat: (B,N,C,HW_pad) bf16.
    Returns (B, C, V_pad) f32."""
    B, N, D, _ = depth.shape
    C = feat.shape[2]
    unroll = max(1, min(unroll, D))
    kernel = _make_pool_kernel(D, v_tile, N, n_hw, n_vt, geom_consts,
                               dstart, dstep, ow_dtype, unroll)
    return pl.pallas_call(
        kernel,
        out_shape=jax.ShapeDtypeStruct((B, C, V_pad), jnp.float32),
        grid_spec=pltpu.PrefetchScalarGridSpec(
            num_scalar_prefetch=1,
            grid=(B, n_vt, N, n_hw),
            in_specs=[
                pl.BlockSpec((2, hwc), lambda b, v, n, h, occ_r: (0, h)),
                pl.BlockSpec(memory_space=pltpu.MemorySpace.SMEM),
                pl.BlockSpec((None, None, D, hwc),
                             lambda b, v, n, h, occ_r: (b, n, 0, h)),
                pl.BlockSpec((None, None, C, hwc),
                             lambda b, v, n, h, occ_r: (b, n, 0, h)),
            ],
            out_specs=pl.BlockSpec((None, C, v_tile),
                                   lambda b, v, n, h, occ_r: (b, 0, v)),
        ),
        compiler_params=pltpu.CompilerParams(
            dimension_semantics=("parallel", "parallel",
                                 "arbitrary", "arbitrary"),
            vmem_limit_bytes=int(vmem_limit)),
    )(occ, uv_pad, params, depth, feat)


# ----------------------------------------------------------------------------
# BaseTransform port
# ----------------------------------------------------------------------------
class BaseTransformPallas:
    def __init__(self, in_channels, out_channels, image_size, feature_size,
                 xbound, ybound, zbound, dbound, param_key,
                 max_v_tile=2048, max_hw_chunk=1024, depth_unroll=4,
                 ow_dtype=None):
        self.in_channels = in_channels
        self.C = out_channels
        self.image_size = image_size
        self.feature_size = feature_size
        self.dbound = dbound
        self.dx, self.bx, self.nx = gen_dx_bx(xbound, ybound, zbound)
        NX, NY, NZ = self.nx
        self.V = NX * NY * NZ
        self.dstart = float(dbound[0])
        self.dstep = float(dbound[2])
        self.geom_consts = (NX, NY, NZ,
                            self.bx[0] - self.dx[0] / 2.0,
                            self.bx[1] - self.dx[1] / 2.0,
                            self.bx[2] - self.dx[2] / 2.0,
                            self.dx[0], self.dx[1], self.dx[2])

        iH, iW = image_size
        fH, fW = feature_size
        self.HW = fH * fW
        ds = jnp.arange(dbound[0], dbound[1], dbound[2], dtype=jnp.float32)
        self.D = int(ds.shape[0])

        # ---- tiling / dtype decisions (derived, not hardcoded) -------------
        self.ow_dtype = ow_dtype if ow_dtype is not None else _default_ow_dtype()
        ow_bytes = 2 if self.ow_dtype == jnp.bfloat16 else 4
        hwc = 128
        hw_target = min(max(128, max_hw_chunk), _round_up(self.HW, 128))
        while hwc * 2 <= hw_target:
            hwc *= 2
        v_tile = 128
        v_target = min(max(128, max_v_tile), _round_up(self.V, 128))
        while v_tile * 2 <= v_target:
            v_tile *= 2
        budget = _vmem_budget_bytes()
        while (_pool_vmem_estimate(v_tile, hwc, self.C, self.D, ow_bytes)
               > budget and (v_tile > 128 or hwc > 128)):
            if v_tile >= hwc and v_tile > 128:
                v_tile //= 2
            elif hwc > 128:
                hwc //= 2
            else:
                v_tile //= 2
        self.v_tile, self.hwc = v_tile, hwc
        self.HW_pad = _round_up(self.HW, hwc)
        self.V_pad = _round_up(self.V, v_tile)
        self.n_hw = self.HW_pad // hwc
        self.n_vt = self.V_pad // v_tile
        self.vmem_limit = budget
        self.depth_unroll = max(1, min(depth_unroll, self.D))

        xs = jnp.linspace(0.0, iW - 1, fW, dtype=jnp.float32)
        ys = jnp.linspace(0.0, iH - 1, fH, dtype=jnp.float32)
        # lane-dense (2, HW_pad) pixel grid consumed by BOTH kernels.
        # hw padding replicates the last pixel; padded points contribute
        # nothing because their depth rows are zero-padded.
        uv = jnp.stack([jnp.tile(xs, fH), jnp.repeat(ys, fW)], axis=0)
        pad = self.HW_pad - self.HW
        if pad:
            uv = jnp.pad(uv, ((0, 0), (0, pad)), mode="edge")
        self.uv = uv
        # full (D, fH, fW, 3) frustum kept only for the reference self-check
        self.frustum = jnp.stack([
            jnp.broadcast_to(xs[None, None, :], (self.D, fH, fW)),
            jnp.broadcast_to(ys[None, :, None], (self.D, fH, fW)),
            jnp.broadcast_to(ds[:, None, None], (self.D, fH, fW))], axis=-1)

        # TODO(synk): get_cam_feats raises NotImplementedError in the PyTorch
        # BaseTransform; substitute a deterministic LSS-style depth net
        # (1x1 conv + depth softmax) so the forward pass is runnable.
        self.depthnet_w = 0.1 * jax.random.normal(
            param_key, (self.D + self.C, in_channels), jnp.float32)

    # camera features: depth probs + context features; the DxC outer product
    # is NOT materialized — it is fused into the bev_pool kernel.
    def get_cam_feats(self, img):
        B, N = img.shape[:2]
        y = jnp.einsum('bnchw,oc->bnohw', img, self.depthnet_w)
        depth = jax.nn.softmax(y[:, :, :self.D], axis=2)
        feat = y[:, :, self.D:]
        return (depth.reshape(B, N, self.D, self.HW),
                feat.reshape(B, N, self.C, self.HW))

    # tiny 3x3 algebra (glue); heavy per-point work runs in the Pallas kernels
    def _compose_transforms(self, rots, trans, intrins, post_rots, post_trans,
                            l2e_rots, l2e_trans, extra_rots, extra_trans):
        A = jnp.linalg.inv(post_rots)                                 # (B,N,3,3)
        a = -jnp.einsum('bnij,bnj->bni', A, post_trans)               # (B,N,3)
        M2 = jnp.einsum('bnij,bnjk->bnik', rots, jnp.linalg.inv(intrins))
        M43 = jnp.einsum('bij,bjk->bik', extra_rots, jnp.linalg.inv(l2e_rots))
        Bm = jnp.einsum('bij,bnjk->bnik', M43, M2)                    # (B,N,3,3)
        bv = (jnp.einsum('bij,bnj->bni', M43, trans - l2e_trans[:, None, :])
              + extra_trans[:, None, :])                              # (B,N,3)
        return A, a, Bm, bv

    def _compose_params(self, rots, trans, intrins, post_rots, post_trans,
                        l2e_rots, l2e_trans, extra_rots, extra_trans):
        B, N = rots.shape[:2]
        A, a, Bm, bv = self._compose_transforms(
            rots, trans, intrins, post_rots, post_trans,
            l2e_rots, l2e_trans, extra_rots, extra_trans)
        return jnp.concatenate(
            [A.reshape(B, N, 9), a.reshape(B, N, 3),
             Bm.reshape(B, N, 9), bv.reshape(B, N, 3)],
            axis=-1).reshape(B * N, 24).astype(jnp.float32)

    def _compute_occupancy(self, flat_bn):
        """flat_bn: (B*N, D, HW_pad) int32 -> (B*N*n_hw*n_vt,) int32 mask."""
        vt = jnp.where(flat_bn >= 0, flat_bn // self.v_tile, self.n_vt)
        vt = vt.reshape(flat_bn.shape[0], self.D, self.n_hw, self.hwc)
        hit = vt[..., None] == jnp.arange(self.n_vt, dtype=jnp.int32)
        occ = jnp.any(hit, axis=(1, 3))                    # (B*N, n_hw, n_vt)
        return occ.astype(jnp.int32).reshape(-1)

    def forward(self, img, points, camera2ego, lidar2ego, lidar2camera,
                lidar2image, camera_intrinsics, img_aug_matrix,
                lidar_aug_matrix, **kwargs):
        del points, lidar2camera, lidar2image   # unused by BaseTransform.forward
        rots = camera2ego[..., :3, :3]
        trans = camera2ego[..., :3, 3]
        intrins = camera_intrinsics[..., :3, :3]
        post_rots = img_aug_matrix[..., :3, :3]
        post_trans = img_aug_matrix[..., :3, 3]
        l2e_rots = lidar2ego[..., :3, :3]
        l2e_trans = lidar2ego[..., :3, 3]
        extra_rots = lidar_aug_matrix[..., :3, :3]
        extra_trans = lidar_aug_matrix[..., :3, 3]

        B, N = rots.shape[:2]
        params = self._compose_params(rots, trans, intrins, post_rots,
                                      post_trans, l2e_rots, l2e_trans,
                                      extra_rots, extra_trans)
        flat = run_geometry_ids(self.uv, params, self.D, self.hwc,
                                self.geom_consts, self.dstart, self.dstep)
        occ = self._compute_occupancy(flat)

        depth, feat = self.get_cam_feats(img)
        pad = self.HW_pad - self.HW
        if pad:
            depth = jnp.pad(depth, ((0, 0), (0, 0), (0, 0), (0, pad)))
            feat = jnp.pad(feat, ((0, 0), (0, 0), (0, 0), (0, pad)))

        bev = run_bev_pool(occ, self.uv, params,
                           depth.astype(jnp.bfloat16),
                           feat.astype(jnp.bfloat16),
                           v_tile=self.v_tile, hwc=self.hwc,
                           n_vt=self.n_vt, n_hw=self.n_hw, V_pad=self.V_pad,
                           geom_consts=self.geom_consts,
                           dstart=self.dstart, dstep=self.dstep,
                           ow_dtype=self.ow_dtype, unroll=self.depth_unroll,
                           vmem_limit=self.vmem_limit)
        bev = bev[:, :, :self.V]
        NX, NY, NZ = self.nx
        bev = bev.reshape(B, self.C, NZ, NX, NY)
        # torch.cat(x.unbind(dim=2), 1) on (B, C, Z, X, Y) -> (B, Z*C, X, Y)
        return jnp.transpose(bev, (0, 2, 1, 3, 4)).reshape(
            B, NZ * self.C, NX, NY)


# ----------------------------------------------------------------------------
# Plain-JAX references (used only for the in-script self-check).
# ----------------------------------------------------------------------------
def _reference_geometry(frustum, rots, trans, intrins, post_rots, post_trans,
                        l2e_rots, l2e_trans, extra_rots, extra_trans):
    pts = frustum[None, None] - post_trans[:, :, None, None, None, :]
    pts = jnp.einsum('bnij,bndhwj->bndhwi', jnp.linalg.inv(post_rots), pts)
    pts = jnp.concatenate([pts[..., :2] * pts[..., 2:3], pts[..., 2:3]], -1)
    combine = jnp.einsum('bnij,bnjk->bnik', rots, jnp.linalg.inv(intrins))
    pts = jnp.einsum('bnij,bndhwj->bndhwi', combine, pts)
    pts = pts + trans[:, :, None, None, None, :]
    pts = pts - l2e_trans[:, None, None, None, None, :]
    pts = jnp.einsum('bij,bndhwj->bndhwi', jnp.linalg.inv(l2e_rots), pts)
    pts = jnp.einsum('bij,bndhwj->bndhwi', extra_rots, pts)
    pts = pts + extra_trans[:, None, None, None, None, :]
    return pts


def _precomposed_geometry(frustum, A, a, Bm, bv):
    p1 = (jnp.einsum('bnij,dhwj->bndhwi', A, frustum)
          + a[:, :, None, None, None, :])
    p2 = jnp.concatenate([p1[..., :2] * p1[..., 2:3], p1[..., 2:3]], -1)
    return (jnp.einsum('bnij,bndhwj->bndhwi', Bm, p2)
            + bv[:, :, None, None, None, :])


def _reference_bev_pool(geom_b3p, feat_bcp, nx, dx, bx):
    B, _, P = geom_b3p.shape
    NX, NY, NZ = nx
    V = NZ * NX * NY
    shift = jnp.array([bx[0] - dx[0] / 2, bx[1] - dx[1] / 2,
                       bx[2] - dx[2] / 2], jnp.float32).reshape(1, 3, 1)
    dxv = jnp.array(dx, jnp.float32).reshape(1, 3, 1)
    idx = ((geom_b3p - shift) / dxv).astype(jnp.int32)
    xi, yi, zi = idx[:, 0], idx[:, 1], idx[:, 2]
    kept = ((xi >= 0) & (xi < NX) & (yi >= 0) & (yi < NY)
            & (zi >= 0) & (zi < NZ))
    flat = jnp.where(kept, zi * (NX * NY) + xi * NY + yi, V)
    feats = jnp.transpose(feat_bcp, (0, 2, 1))                     # (B, P, C)
    out = jnp.zeros((B, V + 1, feats.shape[-1]), jnp.float32)
    out = out.at[jnp.arange(B)[:, None], flat].add(feats)
    return jnp.transpose(out[:, :V], (0, 2, 1))                    # (B, C, V)


if __name__ == "__main__":
    B, N = 2, 2
    in_channels, out_channels = 8, 16
    image_size = (32, 32)
    feature_size = (4, 4)
    xbound = (-8.0, 8.0, 1.0)
    ybound = (-8.0, 8.0, 1.0)
    zbound = (-10.0, 10.0, 20.0)
    dbound = (1.0, 5.0, 1.0)
    fH, fW = feature_size

    key = jax.random.PRNGKey(0)
    ks = jax.random.split(key, 10)

    # max_v_tile=128 -> V=256 splits into 2 voxel tiles (exercises V tiling
    # and the occupancy-skip path)
    vt = BaseTransformPallas(in_channels, out_channels, image_size,
                             feature_size, xbound, ybound, zbound, dbound,
                             param_key=ks[0], max_v_tile=128)

    def make44(R, t):
        lead = R.shape[:-2]
        M = jnp.zeros(lead + (4, 4), jnp.float32)
        M = M.at[..., :3, :3].set(R)
        M = M.at[..., :3, 3].set(t)
        M = M.at[..., 3, 3].set(1.0)
        return M

    img = jax.random.normal(ks[1], (B, N, in_channels, fH, fW), jnp.float32)

    ang = 0.3 * jax.random.normal(ks[2], (B, N))
    c, s = jnp.cos(ang), jnp.sin(ang)
    z0, o1 = jnp.zeros_like(c), jnp.ones_like(c)
    cam_rot = jnp.stack([jnp.stack([c, -s, z0], -1),
                         jnp.stack([s, c, z0], -1),
                         jnp.stack([z0, z0, o1], -1)], -2)
    camera2ego = make44(cam_rot, 0.5 * jax.random.normal(ks[3], (B, N, 3)))

    foc, cx, cy = 8.0, (image_size[1] - 1) / 2.0, (image_size[0] - 1) / 2.0
    K = jnp.array([[foc, 0.0, cx], [0.0, foc, cy], [0.0, 0.0, 1.0]], jnp.float32)
    camera_intrinsics = make44(jnp.broadcast_to(K, (B, N, 3, 3)),
                               jnp.zeros((B, N, 3)))

    post_rot = (jnp.broadcast_to(jnp.eye(3, dtype=jnp.float32), (B, N, 3, 3))
                + 0.02 * jax.random.normal(ks[4], (B, N, 3, 3)))
    post_trans = jnp.concatenate(
        [2.0 * jax.random.normal(ks[5], (B, N, 2)), jnp.zeros((B, N, 1))], -1)
    img_aug_matrix = make44(post_rot, post_trans)

    lidar2ego = make44(jnp.eye(3, dtype=jnp.float32)
                       + 0.01 * jax.random.normal(ks[6], (B, 3, 3)),
                       0.2 * jax.random.normal(ks[7], (B, 3)))
    lidar_aug_matrix = make44(jnp.eye(3, dtype=jnp.float32)
                              + 0.01 * jax.random.normal(ks[8], (B, 3, 3)),
                              0.2 * jax.random.normal(ks[9], (B, 3)))

    points = jnp.zeros((B, 16, 3), jnp.float32)                 # unused
    lidar2camera = jnp.broadcast_to(jnp.eye(4, dtype=jnp.float32), (B, N, 4, 4))
    lidar2image = lidar2camera                                  # unused

    out = vt.forward(img, points, camera2ego, lidar2ego, lidar2camera,
                     lidar2image, camera_intrinsics, img_aug_matrix,
                     lidar_aug_matrix)
    out = jax.block_until_ready(out)

    # ---- self-check against plain-JAX references ---------------------------
    rots = camera2ego[..., :3, :3]
    trans = camera2ego[..., :3, 3]
    intrins = camera_intrinsics[..., :3, :3]
    post_rots = img_aug_matrix[..., :3, :3]
    post_trans_ = img_aug_matrix[..., :3, 3]
    l2e_rots = lidar2ego[..., :3, :3]
    l2e_trans = lidar2ego[..., :3, 3]
    extra_rots = lidar_aug_matrix[..., :3, :3]
    extra_trans = lidar_aug_matrix[..., :3, 3]

    # 1) pre-composed affine matches the sequential PyTorch-style geometry
    A, a, Bm, bv = vt._compose_transforms(rots, trans, intrins, post_rots,
                                          post_trans_, l2e_rots, l2e_trans,
                                          extra_rots, extra_trans)
    geom_pre = _precomposed_geometry(vt.frustum, A, a, Bm, bv)
    geom_seq = _reference_geometry(vt.frustum, rots, trans, intrins, post_rots,
                                   post_trans_, l2e_rots, l2e_trans,
                                   extra_rots, extra_trans)
    assert bool(jnp.allclose(geom_pre, geom_seq, atol=5e-3, rtol=1e-3)), \
        "pre-composed geometry mismatch"

    # 2) end-to-end BEV output matches an f32 scatter-add reference
    depth_r, feat_r = vt.get_cam_feats(img)
    x_full = jnp.einsum('bndp,bncp->bndpc', depth_r, feat_r)   # (B,N,D,HW,C)
    P = N * vt.D * vt.HW
    geom_b3p = jnp.transpose(geom_pre.reshape(B, P, 3), (0, 2, 1))
    feat_bcp = jnp.transpose(x_full.reshape(B, P, vt.C), (0, 2, 1))
    bev_ref = _reference_bev_pool(geom_b3p, feat_bcp, vt.nx, vt.dx, vt.bx)
    NX, NY, NZ = vt.nx
    final_ref = jnp.transpose(bev_ref.reshape(B, vt.C, NZ, NX, NY),
                              (0, 2, 1, 3, 4)).reshape(B, NZ * vt.C, NX, NY)
    assert out.shape == (B, NZ * vt.C, NX, NY)
    # tolerance sized for bf16 MXU operands, bf16 depth streaming and (on
    # v6e/v7x) bf16 one-hot accumulation; real bugs are orders of magnitude off
    assert bool(jnp.allclose(out, final_ref, atol=3e-2, rtol=3e-2)), \
        "bev_pool kernel mismatch"

    print("KERNEL_OK")
</pallas_src>

<mosaic_0001>
module attributes {stable_mosaic.version = 11 : i64} {
  func.func @kernel(%arg0: i32, %arg1: i32, %arg2: memref<2x128xf32, #tpu.memory_space<vmem>>, %arg3: memref<4x24xf32, #tpu.memory_space<smem>>, %arg4: memref<1x4x128xi32, #tpu.memory_space<vmem>>) attributes {dimension_semantics = [#tpu.dimension_semantics<parallel>, #tpu.dimension_semantics<parallel>], iteration_bounds = array<i64: 4, 1>, scalar_prefetch = 0 : i64, scratch_operands = 0 : i64, tpu.core_type = #tpu.core_type<tc>, window_params = [{transform_indices = @transform_0, window_bounds = array<i64: 2, 128>}, {transform_indices = @transform_1, window_bounds = array<i64: 4, 24>}, {transform_indices = @transform_2, window_bounds = array<i64: 1, 4, 128>}]} {
    %c0 = arith.constant 0 : index
    %c0_0 = arith.constant 0 : index
    %0 = vector.load %arg2[%c0, %c0_0] : memref<2x128xf32, #tpu.memory_space<vmem>>, vector<1x128xf32>
    %c1 = arith.constant 1 : index
    %c0_1 = arith.constant 0 : index
    %1 = vector.load %arg2[%c1, %c0_1] : memref<2x128xf32, #tpu.memory_space<vmem>>, vector<1x128xf32>
    %2 = tpu.iota {dimensions = array<i32: 0>} : vector<4x1xi32>
    %3 = arith.sitofp %2 : vector<4x1xi32> to vector<4x1xf32>
    %cst = arith.constant 1.000000e+00 : f32
    %4 = vector.broadcast %cst : f32 to vector<4x1xf32>
    %5 = arith.mulf %3, %4 : vector<4x1xf32>
    %cst_2 = arith.constant 1.000000e+00 : f32
    %6 = vector.broadcast %cst_2 : f32 to vector<4x1xf32>
    %7 = arith.addf %5, %6 : vector<4x1xf32>
    %8 = arith.index_cast %arg0 : i32 to index
    %c0_3 = arith.constant 0 : index
    %9 = memref.load %arg3[%8, %c0_3] : memref<4x24xf32, #tpu.memory_space<smem>>
    %10 = arith.index_cast %arg0 : i32 to index
    %c1_4 = arith.constant 1 : index
    %11 = memref.load %arg3[%10, %c1_4] : memref<4x24xf32, #tpu.memory_space<smem>>
    %12 = arith.index_cast %arg0 : i32 to index
    %c2 = arith.constant 2 : index
    %13 = memref.load %arg3[%12, %c2] : memref<4x24xf32, #tpu.memory_space<smem>>
    %14 = arith.index_cast %arg0 : i32 to index
    %c3 = arith.constant 3 : index
    %15 = memref.load %arg3[%14, %c3] : memref<4x24xf32, #tpu.memory_space<smem>>
    %16 = arith.index_cast %arg0 : i32 to index
    %c4 = arith.constant 4 : index
    %17 = memref.load %arg3[%16, %c4] : memref<4x24xf32, #tpu.memory_space<smem>>
    %18 = arith.index_cast %arg0 : i32 to index
    %c5 = arith.constant 5 : index
    %19 = memref.load %arg3[%18, %c5] : memref<4x24xf32, #tpu.memory_space<smem>>
    %20 = arith.index_cast %arg0 : i32 to index
    %c6 = arith.constant 6 : index
    %21 = memref.load %arg3[%20, %c6] : memref<4x24xf32, #tpu.memory_space<smem>>
    %22 = arith.index_cast %arg0 : i32 to index
    %c7 = arith.constant 7 : index
    %23 = memref.load %arg3[%22, %c7] : memref<4x24xf32, #tpu.memory_space<smem>>
    %24 = arith.index_cast %arg0 : i32 to index
    %c8 = arith.constant 8 : index
    %25 = memref.load %arg3[%24, %c8] : memref<4x24xf32, #tpu.memory_space<smem>>
    %26 = arith.index_cast %arg0 : i32 to index
    %c9 = arith.constant 9 : index
    %27 = memref.load %arg3[%26, %c9] : memref<4x24xf32, #tpu.memory_space<smem>>
    %28 = arith.index_cast %arg0 : i32 to index
    %c10 = arith.constant 10 : index
    %29 = memref.load %arg3[%28, %c10] : memref<4x24xf32, #tpu.memory_space<smem>>
    %30 = arith.index_cast %arg0 : i32 to index
    %c11 = arith.constant 11 : index
    %31 = memref.load %arg3[%30, %c11] : memref<4x24xf32, #tpu.memory_space<smem>>
    %32 = arith.index_cast %arg0 : i32 to index
    %c12 = arith.constant 12 : index
    %33 = memref.load %arg3[%32, %c12] : memref<4x24xf32, #tpu.memory_space<smem>>
    %34 = arith.index_cast %arg0 : i32 to index
    %c13 = arith.constant 13 : index
    %35 = memref.load %arg3[%34, %c13] : memref<4x24xf32, #tpu.memory_space<smem>>
    %36 = arith.index_cast %arg0 : i32 to index
    %c14 = arith.constant 14 : index
    %37 = memref.load %arg3[%36, %c14] : memref<4x24xf32, #tpu.memory_space<smem>>
    %38 = arith.index_cast %arg0 : i32 to index
    %c15 = arith.constant 15 : index
    %39 = memref.load %arg3[%38, %c15] : memref<4x24xf32, #tpu.memory_space<smem>>
    %40 = arith.index_cast %arg0 : i32 to index
    %c16 = arith.constant 16 : index
    %41 = memref.load %arg3[%40, %c16] : memref<4x24xf32, #tpu.memory_space<smem>>
    %42 = arith.index_cast %arg0 : i32 to index
    %c17 = arith.constant 17 : index
    %43 = memref.load %arg3[%42, %c17] : memref<4x24xf32, #tpu.memory_space<smem>>
    %44 = arith.index_cast %arg0 : i32 to index
    %c18 = arith.constant 18 : index
    %45 = memref.load %arg3[%44, %c18] : memref<4x24xf32, #tpu.memory_space<smem>>
    %46 = arith.index_cast %arg0 : i32 to index
    %c19 = arith.constant 19 : index
    %47 = memref.load %arg3[%46, %c19] : memref<4x24xf32, #tpu.memory_space<smem>>
    %48 = arith.index_cast %arg0 : i32 to index
    %c20 = arith.constant 20 : index
    %49 = memref.load %arg3[%48, %c20] : memref<4x24xf32, #tpu.memory_space<smem>>
    %50 = arith.index_cast %arg0 : i32 to index
    %c21 = arith.constant 21 : index
    %51 = memref.load %arg3[%50, %c21] : memref<4x24xf32, #tpu.memory_space<smem>>
    %52 = arith.index_cast %arg0 : i32 to index
    %c22 = arith.constant 22 : index
    %53 = memref.load %arg3[%52, %c22] : memref<4x24xf32, #tpu.memory_space<smem>>
    %54 = arith.index_cast %arg0 : i32 to index
    %c23 = arith.constant 23 : index
    %55 = memref.load %arg3[%54, %c23] : memref<4x24xf32, #tpu.memory_space<smem>>
    %56 = vector.broadcast %9 : f32 to vector<1x128xf32>
    %57 = arith.mulf %56, %0 : vector<1x128xf32>
    %58 = vector.broadcast %11 : f32 to vector<1x128xf32>
    %59 = arith.mulf %58, %1 : vector<1x128xf32>
    %60 = arith.addf %57, %59 : vector<1x128xf32>
    %61 = vector.broadcast %13 : f32 to vector<4x1xf32>
    %62 = arith.mulf %61, %7 : vector<4x1xf32>
    %63 = vector.broadcast %60 : vector<1x128xf32> to vector<4x128xf32>
    %64 = vector.broadcast %62 : vector<4x1xf32> to vector<4x128xf32>
    %65 = arith.addf %63, %64 : vector<4x128xf32>
    %66 = vector.broadcast %27 : f32 to vector<4x128xf32>
    %67 = arith.addf %65, %66 : vector<4x128xf32>
    %68 = vector.broadcast %15 : f32 to vector<1x128xf32>
    %69 = arith.mulf %68, %0 : vector<1x128xf32>
    %70 = vector.broadcast %17 : f32 to vector<1x128xf32>
    %71 = arith.mulf %70, %1 : vector<1x128xf32>
    %72 = arith.addf %69, %71 : vector<1x128xf32>
    %73 = vector.broadcast %19 : f32 to vector<4x1xf32>
    %74 = arith.mulf %73, %7 : vector<4x1xf32>
    %75 = vector.broadcast %72 : vector<1x128xf32> to vector<4x128xf32>
    %76 = vector.broadcast %74 : vector<4x1xf32> to vector<4x128xf32>
    %77 = arith.addf %75, %76 : vector<4x128xf32>
    %78 = vector.broadcast %29 : f32 to vector<4x128xf32>
    %79 = arith.addf %77, %78 : vector<4x128xf32>
    %80 = vector.broadcast %21 : f32 to vector<1x128xf32>
    %81 = arith.mulf %80, %0 : vector<1x128xf32>
    %82 = vector.broadcast %23 : f32 to vector<1x128xf32>
    %83 = arith.mulf %82, %1 : vector<1x128xf32>
    %84 = arith.addf %81, %83 : vector<1x128xf32>
    %85 = vector.broadcast %25 : f32 to vector<4x1xf32>
    %86 = arith.mulf %85, %7 : vector<4x1xf32>
    %87 = vector.broadcast %84 : vector<1x128xf32> to vector<4x128xf32>
    %88 = vector.broadcast %86 : vector<4x1xf32> to vector<4x128xf32>
    %89 = arith.addf %87, %88 : vector<4x128xf32>
    %90 = vector.broadcast %31 : f32 to vector<4x128xf32>
    %91 = arith.addf %89, %90 : vector<4x128xf32>
    %92 = arith.mulf %67, %91 : vector<4x128xf32>
    %93 = arith.mulf %79, %91 : vector<4x128xf32>
    %94 = vector.broadcast %33 : f32 to vector<4x128xf32>
    %95 = arith.mulf %94, %92 : vector<4x128xf32>
    %96 = vector.broadcast %35 : f32 to vector<4x128xf32>
    %97 = arith.mulf %96, %93 : vector<4x128xf32>
    %98 = arith.addf %95, %97 : vector<4x128xf32>
    %99 = vector.broadcast %37 : f32 to vector<4x128xf32>
    %100 = arith.mulf %99, %91 : vector<4x128xf32>
    %101 = arith.addf %98, %100 : vector<4x128xf32>
    %102 = vector.broadcast %51 : f32 to vector<4x128xf32>
    %103 = arith.addf %101, %102 : vector<4x128xf32>
    %104 = vector.broadcast %39 : f32 to vector<4x128xf32>
    %105 = arith.mulf %104, %92 : vector<4x128xf32>
    %106 = vector.broadcast %41 : f32 to vector<4x128xf32>
    %107 = arith.mulf %106, %93 : vector<4x128xf32>
    %108 = arith.addf %105, %107 : vector<4x128xf32>
    %109 = vector.broadcast %43 : f32 to vector<4x128xf32>
    %110 = arith.mulf %109, %91 : vector<4x128xf32>
    %111 = arith.addf %108, %110 : vector<4x128xf32>
    %112 = vector.broadcast %53 : f32 to vector<4x128xf32>
    %113 = arith.addf %111, %112 : vector<4x128xf32>
    %114 = vector.broadcast %45 : f32 to vector<4x128xf32>
    %115 = arith.mulf %114, %92 : vector<4x128xf32>
    %116 = vector.broadcast %47 : f32 to vector<4x128xf32>
    %117 = arith.mulf %116, %93 : vector<4x128xf32>
    %118 = arith.addf %115, %117 : vector<4x128xf32>
    %119 = vector.broadcast %49 : f32 to vector<4x128xf32>
    %120 = arith.mulf %119, %91 : vector<4x128xf32>
    %121 = arith.addf %118, %120 : vector<4x128xf32>
    %122 = vector.broadcast %55 : f32 to vector<4x128xf32>
    %123 = arith.addf %121, %122 : vector<4x128xf32>
    %cst_5 = arith.constant -8.000000e+00 : f32
    %124 = vector.broadcast %cst_5 : f32 to vector<4x128xf32>
    %125 = arith.subf %103, %124 : vector<4x128xf32>
    %cst_6 = arith.constant 1.000000e+00 : f32
    %126 = vector.broadcast %cst_6 : f32 to vector<4x128xf32>
    %127 = arith.divf %125, %126 : vector<4x128xf32>
    %128 = arith.fptosi %127 : vector<4x128xf32> to vector<4x128xi32>
    %cst_7 = arith.constant -8.000000e+00 : f32
    %129 = vector.broadcast %cst_7 : f32 to vector<4x128xf32>
    %130 = arith.subf %113, %129 : vector<4x128xf32>
    %cst_8 = arith.constant 1.000000e+00 : f32
    %131 = vector.broadcast %cst_8 : f32 to vector<4x128xf32>
    %132 = arith.divf %130, %131 : vector<4x128xf32>
    %133 = arith.fptosi %132 : vector<4x128xf32> to vector<4x128xi32>
    %cst_9 = arith.constant -1.000000e+01 : f32
    %134 = vector.broadcast %cst_9 : f32 to vector<4x128xf32>
    %135 = arith.subf %123, %134 : vector<4x128xf32>
    %cst_10 = arith.constant 2.000000e+01 : f32
    %136 = vector.broadcast %cst_10 : f32 to vector<4x128xf32>
    %137 = arith.divf %135, %136 : vector<4x128xf32>
    %138 = arith.fptosi %137 : vector<4x128xf32> to vector<4x128xi32>
    %c0_i32 = arith.constant 0 : i32
    %139 = vector.broadcast %c0_i32 : i32 to vector<4x128xi32>
    %140 = arith.cmpi sge, %128, %139 : vector<4x128xi32>
    %c16_i32 = arith.constant 16 : i32
    %141 = vector.broadcast %c16_i32 : i32 to vector<4x128xi32>
    %142 = arith.cmpi slt, %128, %141 : vector<4x128xi32>
    %143 = arith.andi %140, %142 : vector<4x128xi1>
    %c0_i32_11 = arith.constant 0 : i32
    %144 = vector.broadcast %c0_i32_11 : i32 to vector<4x128xi32>
    %145 = arith.cmpi sge, %133, %144 : vector<4x128xi32>
    %146 = arith.andi %143, %145 : vector<4x128xi1>
    %c16_i32_12 = arith.constant 16 : i32
    %147 = vector.broadcast %c16_i32_12 : i32 to vector<4x128xi32>
    %148 = arith.cmpi slt, %133, %147 : vector<4x128xi32>
    %149 = arith.andi %146, %148 : vector<4x128xi1>
    %c0_i32_13 = arith.constant 0 : i32
    %150 = vector.broadcast %c0_i32_13 : i32 to vector<4x128xi32>
    %151 = arith.cmpi sge, %138, %150 : vector<4x128xi32>
    %152 = arith.andi %149, %151 : vector<4x128xi1>
    %c1_i32 = arith.constant 1 : i32
    %153 = vector.broadcast %c1_i32 : i32 to vector<4x128xi32>
    %154 = arith.cmpi slt, %138, %153 : vector<4x128xi32>
    %155 = arith.andi %152, %154 : vector<4x128xi1>
    %c256_i32 = arith.constant 256 : i32
    %156 = vector.broadcast %c256_i32 : i32 to vector<4x128xi32>
    %157 = arith.muli %138, %156 : vector<4x128xi32>
    %c16_i32_14 = arith.constant 16 : i32
    %158 = vector.broadcast %c16_i32_14 : i32 to vector<4x128xi32>
    %159 = arith.muli %128, %158 : vector<4x128xi32>
    %160 = arith.addi %157, %159 : vector<4x128xi32>
    %161 = arith.addi %160, %133 : vector<4x128xi32>
    %c-1_i32 = arith.constant -1 : i32
    %162 = vector.broadcast %c-1_i32 : i32 to vector<4x128xi32>
    %163 = arith.select %155, %161, %162 : vector<4x128xi1>, vector<4x128xi32>
    %c0_15 = arith.constant 0 : index
    %c0_16 = arith.constant 0 : index
    %c0_17 = arith.constant 0 : index
    %164 = vector.load %arg4[%c0_15, %c0_16, %c0_17] : memref<1x4x128xi32, #tpu.memory_space<vmem>>, vector<1x4x128xi32>
    %165 = vector.shape_cast %164 : vector<1x4x128xi32> to vector<4x128xi32>
    %166 = vector.shape_cast %163 : vector<4x128xi32> to vector<1x4x128xi32>
    tpu.vector_store %arg4[%c0_15, %c0_16, %c0_17], %166 {strides = array<i32>} : memref<1x4x128xi32, #tpu.memory_space<vmem>>, vector<1x4x128xi32>,
    return
  }
  func.func @transform_0(%arg0: i32, %arg1: i32) -> (i32, i32) {
    %c0_i32 = arith.constant 0 : i32
    %c0_i32_0 = arith.constant 0 : i32
    return %c0_i32, %arg1 : i32, i32
  }
  func.func @transform_1(%arg0: i32, %arg1: i32) -> (i32, i32) {
    %c0_i32 = arith.constant 0 : i32
    %c0_i32_0 = arith.constant 0 : i32
    %c0_i32_1 = arith.constant 0 : i32
    return %c0_i32, %c0_i32_0 : i32, i32
  }
  func.func @transform_2(%arg0: i32, %arg1: i32) -> (i32, i32, i32) {
    %c0_i32 = arith.constant 0 : i32
    %c0_i32_0 = arith.constant 0 : i32
    return %arg0, %c0_i32, %arg1 : i32, i32, i32
  }
}

</mosaic_0001>

<llo_original>
// kernel: tpu_custom_call.1
$region0: #{tpu_custom_call.1}
  #allocation0 [shape = 'u32[]', space=smem, size = 0x4, offset = 0x4, fixed_abs, tag = 'smem constant byte address 0x4 - core index']
  #allocation1 [shape = 'u32[144,128]{1,0:T(1,128)}', space=vmem, size = 0x12000, scoped, tag = 'internal scratch']
  %s0 = inlined_call_operand.hbm [shape: f32[2,128], index: 0, kind: input, shape index: {}]
  %s1 = inlined_call_operand.hbm [shape: f32[4,24], index: 1, kind: input, shape index: {}]
  %s2 = inlined_call_operand.hbm [shape: s32[4,4,128], index: 2, kind: output, shape index: {}]
  %s3 = sld [smem:[#allocation0]]
  $region49: #{tpu_custom_call.1} parent=0
    _
  %s5 = ssub.s32 1, %s3
  %s6 = scalar_select 0, %s5, %s3
  $region1: #{tpu_custom_call.1} parent=0
    #allocation2 [shape = 'u8[1024]{0}', space=vmem, size = 0x400, scoped, tag = 'input window, operand 0, single buffered']
    #allocation3 [shape = 's32[2]{0}', space=sflag, size = 0x8, scoped, tag = 'scoped memory for tpu_custom_call.1']
    #allocation4 [shape = 's32[2]{0}', space=sflag, size = 0x8, scoped, tag = 'scoped memory for tpu_custom_call.1']
    #allocation5 [shape = 's32[2]{0}', space=sflag, size = 0x8, scoped, tag = 'scoped memory for tpu_custom_call.1']
    #allocation6 [shape = 'u8[2048]{0}', space=smem, size = 0x800, scoped, tag = 'input window, operand 1, single buffered']
    #allocation7 [shape = 'u8[4096]{0}', space=vmem, size = 0x1000, scoped, tag = 'output window, operand 0']
    %7 = vsyncpa [#allocation3], 0
    %8 = vsyncpa [#allocation5], 0
    %9 = vsyncpa [#allocation4], 0
    %s10 = scalar_lea.sflag [#allocation4], 1
    %11 = vsyncpa %s10, 0
    loop: start=0, step=1, limit=6
    $region2: #{tpu_custom_call.1} parent=1 // loop_pre_header
      _
    $region3: #{tpu_custom_call.1} parent=1 // loop_header
      %s13 = sphi 0, %s17
      %p14 = scmp.ge.s32.totalorder %s13, 6
      %s20 = sphi 0, %s32
      %s21 = sphi 0, %s28
      %s22 = sphi 0, %s20
      %s23 = sphi 0, %s21
      %s24 = sphi 0, %s22
      %s25 = sphi 0, %s23
      %s35 = sphi 0, %s37
      %s38 = sphi 0, %s35
      %s39 = sphi 0, %s38
      %s55 = sphi 0, %s39
      %s59 = sphi 0, %s59
      %s61 = sphi 0, %s59
      %s62 = sphi 0, %s61
      %s76 = sphi 0, %s62
      %s84 = sphi 0, %s86
      %s87 = sphi 0, %s84
      %s88 = sphi 0, %s87
      %s104 = sphi 0, %s88
    $region4: #{tpu_custom_call.1} parent=1 // loop_header_branch
      %16 = sbr.rel (%p14) target = $region8
    $region5: #{tpu_custom_call.1} parent=1 // loop_body
      %s18 = ssub.s32 %s13, 1
      %s19 = ssub.s32 %s13, 2
      %s26 = sadd.s32 1, %s21
      %p27 = scmp.ge.s32.totalorder %s26, 1
      %s28 = scalar_select %p27, 0, %s26
      %s29 = sadd.s32 1, %s20
      %s30 = scalar_select %p27, %s29, %s20
      %p31 = scmp.ge.s32.totalorder %s30, 4
      %s32 = scalar_select %p31, 0, %s30
      %s33 = ssub.s32 %s21, %s28
      %p34 = scmp.eq.s32.totalorder %s33, 0
      %s36 = sadd.s32 %s35, 1
      %s37 = scalar_select %p34, %s35, %s36
      %p40 = pneg %p34
      %p41 = scmp.eq.s32.totalorder %s13, 3
      %p42 = por %p40, %p41
      %p43 = scmp.ne.s32.totalorder %s35, %s38
      %p44 = scmp.eq.s32.totalorder %s13, 0
      %p45 = por %p43, %p44
      %p46 = scmp.ne.s32.totalorder %s35, %s38
      %p47 = scmp.eq.s32.totalorder %s18, 3
      %p48 = por %p46, %p47
      %p49 = scmp.ne.s32.totalorder %s38, %s39
      %p50 = scmp.eq.s32.totalorder %s18, 0
      %p51 = por %p49, %p50
      %p52 = scmp.ne.s32.totalorder %s38, %s39
      %p53 = scmp.eq.s32.totalorder %s19, 3
      %p54 = por %p52, %p53
      %p56 = scmp.ne.s32.totalorder %s39, %s55
      %p57 = scmp.eq.s32.totalorder %s19, 0
      %p58 = por %p56, %p57
      %s60 = sadd.s32 %s59, 1
      %p63 = scmp.eq.s32.totalorder %s13, 3
      %p64 = scmp.ne.s32.totalorder %s59, %s61
      %p65 = scmp.eq.s32.totalorder %s13, 0
      %p66 = por %p64, %p65
      %p67 = scmp.ne.s32.totalorder %s59, %s61
      %p68 = scmp.eq.s32.totalorder %s18, 3
      %p69 = por %p67, %p68
      %p70 = scmp.ne.s32.totalorder %s61, %s62
      %p71 = scmp.eq.s32.totalorder %s18, 0
      %p72 = por %p70, %p71
      %p73 = scmp.ne.s32.totalorder %s61, %s62
      %p74 = scmp.eq.s32.totalorder %s19, 3
      %p75 = por %p73, %p74
      %p77 = scmp.ne.s32.totalorder %s62, %s76
      %p78 = scmp.eq.s32.totalorder %s19, 0
      %p79 = por %p77, %p78
      %s80 = ssub.s32 %s20, %s32
      %s81 = ssub.s32 %s21, %s28
      %s82 = sor.u32 %s80, %s81
      %p83 = scmp.eq.s32.totalorder %s82, 0
      %s85 = sadd.s32 %s84, 1
      %s86 = scalar_select %p83, %s84, %s85
      %p89 = pneg %p83
      %p90 = scmp.eq.s32.totalorder %s13, 3
      %p91 = por %p89, %p90
      %p92 = scmp.ne.s32.totalorder %s84, %s87
      %p93 = scmp.eq.s32.totalorder %s13, 0
      %p94 = por %p92, %p93
      %p95 = scmp.ne.s32.totalorder %s84, %s87
      %p96 = scmp.eq.s32.totalorder %s18, 3
      %p97 = por %p95, %p96
      %p98 = scmp.ne.s32.totalorder %s87, %s88
      %p99 = scmp.eq.s32.totalorder %s18, 0
      %p100 = por %p98, %p99
      %p101 = scmp.ne.s32.totalorder %s87, %s88
      %p102 = scmp.eq.s32.totalorder %s19, 3
      %p103 = por %p101, %p102
      %p105 = scmp.ne.s32.totalorder %s88, %s104
      %p106 = scmp.eq.s32.totalorder %s19, 0
      %p107 = por %p105, %p106
      %p108 = scmp.le.s32.totalorder 1, %s13
      %p109 = scmp.lt.s32.totalorder %s13, 5
      %p110 = pnand %p108, %p109
      %p111 = pneg %p110
      // Predicated region
      $region9: #{tpu_custom_call.1} parent=5 // pred_check
        _
      $region10: #{tpu_custom_call.1} parent=5 // pred_check_branch
        %113 = sbr.rel (%p110) target = $region12
      $region11: #{tpu_custom_call.1} parent=5 // pred_region
        %s114 = ssub.s32 %s13, 1
        // Predicated region
        $region13: #{tpu_custom_call.1} parent=11 // pred_check
          %p115 = pneg %p51
        $region14: #{tpu_custom_call.1} parent=11 // pred_check_branch
          %117 = sbr.rel (%p115) target = $region16
        $region15: #{tpu_custom_call.1} parent=11 // pred_region
          %s119 = ssub.s32 32, 32
          %120 = vsyncadd [#allocation3], %s119
          %s121 = smul.addr %s23, 32
          %s122 = scalar_lea.hbm %s0, %s121
          %s124 = sshll.u32 [#allocation2], 4
          %s125 = int_to_ptr.vmem [resolvable:$true] %s124
          %127 = dma.hbm_to_vmem [thread:$0]  %s122, 32, %s125, [#allocation3]
        $region16: #{tpu_custom_call.1} parent=11 // pred_fallthru
          _
        // Predicated region
        $region17: #{tpu_custom_call.1} parent=11 // pred_check
          %p128 = pneg %p72
        $region18: #{tpu_custom_call.1} parent=11 // pred_check_branch
          %130 = sbr.rel (%p128) target = $region20
        $region19: #{tpu_custom_call.1} parent=11 // pred_region
          %s132 = ssub.s32 64, 64
          %133 = vsyncadd [#allocation5], %s132
          %136 = dma.hbm_to_smem %s1, 64, [#allocation6], [#allocation5]
        $region20: #{tpu_custom_call.1} parent=11 // pred_fallthru
          _
      $region12: #{tpu_custom_call.1} parent=5 // pred_fallthru
        _
      %p137 = scmp.lt.s32.totalorder %s13, 4
      // Predicated region
      $region21: #{tpu_custom_call.1} parent=5 // pred_check
        %p138 = pneg %p137
      $region22: #{tpu_custom_call.1} parent=5 // pred_check_branch
        %140 = sbr.rel (%p138) target = $region24
      $region23: #{tpu_custom_call.1} parent=5 // pred_region
        _
      $region24: #{tpu_custom_call.1} parent=5 // pred_fallthru
        _
      %p141 = scmp.le.s32.totalorder 1, %s13
      %p142 = scmp.lt.s32.totalorder %s13, 5
      %p143 = pnand %p141, %p142
      %p144 = pneg %p143
      // Predicated region
      $region25: #{tpu_custom_call.1} parent=5 // pred_check
        _
      $region26: #{tpu_custom_call.1} parent=5 // pred_check_branch
        %146 = sbr.rel (%p143) target = $region28
      $region27: #{tpu_custom_call.1} parent=5 // pred_region
        %s147 = ssub.s32 %s13, 1
        // Predicated region
        $region29: #{tpu_custom_call.1} parent=27 // pred_check
          %p148 = pneg %p51
        $region30: #{tpu_custom_call.1} parent=27 // pred_check_branch
          %150 = sbr.rel (%p148) target = $region32
        $region31: #{tpu_custom_call.1} parent=27 // pred_region
          %151 = dma.done [#allocation3], 32
        $region32: #{tpu_custom_call.1} parent=27 // pred_fallthru
          _
        // Predicated region
        $region33: #{tpu_custom_call.1} parent=27 // pred_check
          %p152 = pneg %p72
        $region34: #{tpu_custom_call.1} parent=27 // pred_check_branch
          %154 = sbr.rel (%p152) target = $region36
        $region35: #{tpu_custom_call.1} parent=27 // pred_region
          %155 = dma.done [#allocation5], 64
        $region36: #{tpu_custom_call.1} parent=27 // pred_fallthru
          _
        %156 = sfence
        %p157 = pneg %p51
        %p158 = pneg %p48
        %p159 = pneg %p72
        %p160 = pneg %p69
        %p161 = pneg %p100
        %p162 = pneg %p97
        %s163 = sand.u32 %s87, 1
        %s164 = scalar_lea.sflag [#allocation4], %s163
        %s165 = sand.u32 %s87, 1
        %s166 = smul.addr %s165, 4
        %s167 = scalar_lea.vmem [#allocation7], %s166
        %v168 = vld [vmem:[#allocation2] sm:$0x1]
        %v169 = vld [vmem:[#allocation2 + $0x1] sm:$0x1]
        %v170 = vlaneseq
        %v171 = vshrl.u32 %v170, 7
        %v172 = vcvt.s32.f32 %v171
        %v173 = vadd.f32 %v172, 1.0
        %s174 = smul.u32 %s22, 128
        %s175 = sld [smem:[#allocation6 + %s174]]
        %s176 = sadd.s32 %s174, 1
        %s177 = sld [smem:[#allocation6 + %s176]]
        %s178 = sadd.s32 %s174, 2
        %s179 = sld [smem:[#allocation6 + %s178]]
        %s180 = sadd.s32 %s174, 3
        %s181 = sld [smem:[#allocation6 + %s180]]
        %s182 = sadd.s32 %s174, 4
        %s183 = sld [smem:[#allocation6 + %s182]]
        %s184 = sadd.s32 %s174, 5
        %s185 = sld [smem:[#allocation6 + %s184]]
        %s186 = sadd.s32 %s174, 6
        %s187 = sld [smem:[#allocation6 + %s186]]
        %s188 = sadd.s32 %s174, 7
        %s189 = sld [smem:[#allocation6 + %s188]]
        %s190 = sadd.s32 %s174, 8
        %s191 = sld [smem:[#allocation6 + %s190]]
        %s192 = sadd.s32 %s174, 9
        %s193 = sld [smem:[#allocation6 + %s192]]
        %s194 = sadd.s32 %s174, 10
        %s195 = sld [smem:[#allocation6 + %s194]]
        %s196 = sadd.s32 %s174, 11
        %s197 = sld [smem:[#allocation6 + %s196]]
        %s198 = sadd.s32 %s174, 12
        %s199 = sld [smem:[#allocation6 + %s198]]
        %s200 = sadd.s32 %s174, 13
        %s201 = sld [smem:[#allocation6 + %s200]]
        %s202 = sadd.s32 %s174, 14
        %s203 = sld [smem:[#allocation6 + %s202]]
        %s204 = sadd.s32 %s174, 15
        %s205 = sld [smem:[#allocation6 + %s204]]
        %s206 = sadd.s32 %s174, 16
        %s207 = sld [smem:[#allocation6 + %s206]]
        %s208 = sadd.s32 %s174, 17
        %s209 = sld [smem:[#allocation6 + %s208]]
        %s210 = sadd.s32 %s174, 18
        %s211 = sld [smem:[#allocation6 + %s210]]
        %s212 = sadd.s32 %s174, 19
        %s213 = sld [smem:[#allocation6 + %s212]]
        %s214 = sadd.s32 %s174, 20
        %s215 = sld [smem:[#allocation6 + %s214]]
        %s216 = sadd.s32 %s174, 21
        %s217 = sld [smem:[#allocation6 + %s216]]
        %s218 = sadd.s32 %s174, 22
        %s219 = sld [smem:[#allocation6 + %s218]]
        %s220 = sadd.s32 %s174, 23
        %s221 = sld [smem:[#allocation6 + %s220]]
        %v222 = vstv %s175
        %v223 = vmul.f32 %v222, %v168
        %v224 = vstv %s177
        %v225 = vmul.f32 %v224, %v169
        %v226 = vadd.f32 %v223, %v225
        %v227 = vstv %s179
        %v228 = vmul.f32 %v227, %v173
        %v229 = vlaneseq
        %v230 = vshrl.u32 %v229, 7
        %v231 = vsub.s32 0, %v230
        %v232 = vrot.slane %v226, %v231
        %v233 = vadd.f32 %v232, %v228
        %v234 = vstv %s193
        %v235 = vadd.f32 %v233, %v234
        %v236 = vstv %s181
        %v237 = vmul.f32 %v236, %v168
        %v238 = vstv %s183
        %v239 = vmul.f32 %v238, %v169
        %v240 = vadd.f32 %v237, %v239
        %v241 = vstv %s185
        %v242 = vmul.f32 %v241, %v173
        %v243 = vlaneseq
        %v244 = vshrl.u32 %v243, 7
        %v245 = vsub.s32 0, %v244
        %v246 = vrot.slane %v240, %v245
        %v247 = vadd.f32 %v246, %v242
        %v248 = vstv %s195
        %v249 = vadd.f32 %v247, %v248
        %v250 = vstv %s187
        %v251 = vmul.f32 %v250, %v168
        %v252 = vstv %s189
        %v253 = vmul.f32 %v252, %v169
        %v254 = vadd.f32 %v251, %v253
        %v255 = vstv %s191
        %v256 = vmul.f32 %v255, %v173
        %v257 = vlaneseq
        %v258 = vshrl.u32 %v257, 7
        %v259 = vsub.s32 0, %v258
        %v260 = vrot.slane %v254, %v259
        %v261 = vadd.f32 %v260, %v256
        %v262 = vstv %s197
        %v263 = vadd.f32 %v261, %v262
        %v264 = vmul.f32 %v235, %v263
        %v265 = vmul.f32 %v249, %v263
        %v266 = vstv %s199
        %v267 = vmul.f32 %v266, %v264
        %v268 = vstv %s201
        %v269 = vmul.f32 %v268, %v265
        %v270 = vadd.f32 %v267, %v269
        %v271 = vstv %s203
        %v272 = vmul.f32 %v271, %v263
        %v273 = vadd.f32 %v270, %v272
        %v274 = vstv %s217
        %v275 = vadd.f32 %v273, %v274
        %v276 = vstv %s205
        %v277 = vmul.f32 %v276, %v264
        %v278 = vstv %s207
        %v279 = vmul.f32 %v278, %v265
        %v280 = vadd.f32 %v277, %v279
        %v281 = vstv %s209
        %v282 = vmul.f32 %v281, %v263
        %v283 = vadd.f32 %v280, %v282
        %v284 = vstv %s219
        %v285 = vadd.f32 %v283, %v284
        %v286 = vstv %s211
        %v287 = vmul.f32 %v286, %v264
        %v288 = vstv %s213
        %v289 = vmul.f32 %v288, %v265
        %v290 = vadd.f32 %v287, %v289
        %v291 = vstv %s215
        %v292 = vmul.f32 %v291, %v263
        %v293 = vadd.f32 %v290, %v292
        %v294 = vstv %s221
        %v295 = vadd.f32 %v293, %v294
        %v296 = vsub.f32 %v275, -8.0
        %v297 = vcvt.f32.s32.to.zero.pseudo %v296
        %v298 = vsub.f32 %v285, -8.0
        %v299 = vcvt.f32.s32.to.zero.pseudo %v298
        %v300 = vsub.f32 %v295, -10.0
        %v301 = vrcp.pop 20.0
        %v302 = vmul.f32 %v300, %v301
        %v303 = vcvt.f32.s32.to.zero.pseudo %v302
        %vm304 = vcmp.ge.s32.totalorder %v297, 0
        %vm305 = vcmp.lt.s32.totalorder %v297, 16
        %vm306 = vmand %vm304, %vm305
        %vm307 = vcmp.ge.s32.totalorder %v299, 0
        %vm308 = vmand %vm306, %vm307
        %vm309 = vcmp.lt.s32.totalorder %v299, 16
        %vm310 = vmand %vm308, %vm309
        %vm311 = vcmp.ge.s32.totalorder %v303, 0
        %vm312 = vmand %vm310, %vm311
        %vm313 = vcmp.lt.s32.totalorder %v303, 1
        %vm314 = vmand %vm312, %vm313
        %v315 = vmul.u32 %v303, 256
        %v316 = vmul.u32 %v297, 16
        %v317 = vadd.s32 %v315, %v316
        %v318 = vadd.s32 %v317, %v299
        %v319 = vsel %vm314, %v318, 4294967295
        %320 = vst [vmem:[%s167] sm:$0xf] %v319
        %s321 = sand.u32 %s87, 1
        %s322 = scalar_lea.sflag [#allocation4], %s321
        %s323 = sand.u32 %s87, 1
        %s324 = smul.addr %s323, 4
        %s325 = scalar_lea.vmem [#allocation7], %s324
        // Predicated region
        $region37: #{tpu_custom_call.1} parent=27 // pred_check
          %p326 = pneg %p97
        $region38: #{tpu_custom_call.1} parent=27 // pred_check_branch
          %328 = sbr.rel (%p326) target = $region40
        $region39: #{tpu_custom_call.1} parent=27 // pred_region
          %s330 = ssub.s32 64, 64
          %331 = vsyncadd %s322, %s330
          %s332 = sadd.s32 %s23, %s22
          %s333 = smul.addr %s332, 64
          %s334 = scalar_lea.hbm %s2, %s333
          %s336 = sshll.u32 %s325, 4
          %s337 = int_to_ptr.vmem [resolvable:$true] %s336
          %339 = dma.vmem_to_hbm [thread:$0]  %s337, 64, %s334, %s322
        $region40: #{tpu_custom_call.1} parent=27 // pred_fallthru
          _
      $region28: #{tpu_custom_call.1} parent=5 // pred_fallthru
        _
      %p340 = scmp.le.s32.totalorder 2, %s13
      // Predicated region
      $region41: #{tpu_custom_call.1} parent=5 // pred_check
        %p341 = pneg %p340
      $region42: #{tpu_custom_call.1} parent=5 // pred_check_branch
        %343 = sbr.rel (%p341) target = $region44
      $region43: #{tpu_custom_call.1} parent=5 // pred_region
        %s344 = ssub.s32 %s13, 2
        // Predicated region
        $region45: #{tpu_custom_call.1} parent=43 // pred_check
          %p345 = pneg %p103
        $region46: #{tpu_custom_call.1} parent=43 // pred_check_branch
          %347 = sbr.rel (%p345) target = $region48
        $region47: #{tpu_custom_call.1} parent=43 // pred_region
          %s348 = sand.u32 %s88, 1
          %s349 = scalar_lea.sflag [#allocation4], %s348
          %s350 = sand.u32 %s88, 1
          %s351 = smul.addr %s350, 4
          %s352 = scalar_lea.vmem [#allocation7], %s351
          %353 = dma.done %s349, 64
        $region48: #{tpu_custom_call.1} parent=43 // pred_fallthru
          _
      $region44: #{tpu_custom_call.1} parent=5 // pred_fallthru
        _
    $region6: #{tpu_custom_call.1} parent=1 // loop_footer
      %s17 = sadd.s32 1, %s13
    $region7: #{tpu_custom_call.1} parent=1 // loop_footer_branch
      %12 = sbr.rel target = $region3
    $region8: #{tpu_custom_call.1} parent=1 // loop_exit
      _
    %354 = vsyncpa [#allocation3], 1
    %s355 = scalar_lea.sflag [#allocation3], 1
    %356 = vsyncpa %s355, 1
    %357 = vsyncpa [#allocation4], 1
    %s358 = scalar_lea.sflag [#allocation4], 1
    %359 = vsyncpa %s358, 1
    %360 = vsyncpa [#allocation5], 1
    %s361 = scalar_lea.sflag [#allocation5], 1
    %362 = vsyncpa %s361, 1

</llo_original>
